<compile_context>
chip_gen: v5e
topology: v5e:2x2
jax: 0.10.0
libtpu: 0.0.40
codegen_flags: <defaults>
</compile_context>

<pallas_src>
import functools
import math

import jax
import jax.numpy as jnp
import numpy as np
from jax.experimental import pallas as pl
from jax.experimental.pallas import tpu as pltpu


# ----------------------------------------------------------------------------
# Helpers
# ----------------------------------------------------------------------------
def _round_up(x, m):
    return ((x + m - 1) // m) * m


_MM_BUDGET = 20 * 1024 * 1024          # bytes for double-buffered A+B bf16 tiles
_VMEM_LIMIT = 48 * 1024 * 1024         # scoped VMEM limit (safe on 64 MiB v7x)


def _choose_tk(Kp, TN, M):
    """Smallest number of K chunks (128-aligned, dividing Kp) that fits the budget."""
    n128 = Kp // 128
    for nk in range(1, n128 + 1):
        if n128 % nk:
            continue
        tk = Kp // nk
        if 4 * tk * (TN + M) <= _MM_BUDGET:   # 2 bytes * 2 buffers * (B tile + A tile)
            return tk, nk
    return 128, n128


# ----------------------------------------------------------------------------
# Pallas kernels
# ----------------------------------------------------------------------------
def _matmul_kernel(a_ref, b_ref, bias_ref, o_ref, *, act):
    k = pl.program_id(1)

    @pl.when(k == 0)
    def _():
        o_ref[...] = jnp.zeros_like(o_ref)

    o_ref[...] += jnp.dot(a_ref[...], b_ref[...],
                          preferred_element_type=jnp.float32)

    @pl.when(k == pl.num_programs(1) - 1)
    def _():
        y = o_ref[...] + bias_ref[...]
        if act == "silu":
            y = y * jax.nn.sigmoid(y)
        o_ref[...] = y


@functools.partial(jax.jit, static_argnames=("n_orig", "act"))
def pallas_matmul_fused(a, w, bias, n_orig, act="none"):
    """a: (M, K) f32; w: (Kp, Np) bf16 pre-padded; bias: (1, Np) f32.
    Returns (M, n_orig) f32 with fused bias (+ optional SiLU)."""
    M, K = a.shape
    Kp, Np = w.shape
    if K != Kp:
        a = jnp.pad(a, ((0, 0), (0, Kp - K)))
    a = a.astype(jnp.bfloat16)
    TN = 256 if Np % 256 == 0 else 128
    tk, nk = _choose_tk(Kp, TN, M)
    out = pl.pallas_call(
        functools.partial(_matmul_kernel, act=act),
        out_shape=jax.ShapeDtypeStruct((M, Np), jnp.float32),
        grid=(Np // TN, nk),
        in_specs=[pl.BlockSpec((M, tk), lambda n, k: (0, k)),
                  pl.BlockSpec((tk, TN), lambda n, k: (k, n)),
                  pl.BlockSpec((1, TN), lambda n, k: (0, n))],
        out_specs=pl.BlockSpec((M, TN), lambda n, k: (0, n)),
        compiler_params=pltpu.CompilerParams(
            dimension_semantics=("parallel", "arbitrary"),
            vmem_limit_bytes=_VMEM_LIMIT),
    )(a, w, bias)
    if Np != n_orig:
        out = out[:, :n_orig]
    return out


def _attn_kernel(q_ref, k_ref, v_ref, o_ref, *, scale):
    q = q_ref[...]                     # (bh, Sq, D) bf16
    k = k_ref[...]                     # (bh, Sk, D) bf16
    v = v_ref[...]                     # (bh, Sk, D) bf16
    s = jnp.einsum('bqd,bkd->bqk', q, k,
                   preferred_element_type=jnp.float32) * scale
    m = jnp.max(s, axis=-1, keepdims=True)
    p = jnp.exp(s - m)
    denom = jnp.sum(p, axis=-1, keepdims=True)
    p = p * pl.reciprocal(denom, approx=True)
    o_ref[...] = jnp.einsum('bqk,bkd->bqd', p.astype(v.dtype), v,
                            preferred_element_type=jnp.float32)


@functools.partial(jax.jit, static_argnames=("scale",))
def pallas_attention(q, k, v, scale):
    """q: (BH, Sq, D), k/v: (BH, Sk, D) f32 -> (BH, Sq, D) f32. All heads batched."""
    BH, Sq, D = q.shape
    _, Sk, _ = k.shape
    qb, kb, vb = (t.astype(jnp.bfloat16) for t in (q, k, v))
    g = 2 if BH % 2 == 0 else 1         # 2 parallel steps -> both v7x TensorCores
    bh = BH // g
    return pl.pallas_call(
        functools.partial(_attn_kernel, scale=scale),
        out_shape=jax.ShapeDtypeStruct((BH, Sq, D), jnp.float32),
        grid=(g,),
        in_specs=[pl.BlockSpec((bh, Sq, D), lambda i: (i, 0, 0)),
                  pl.BlockSpec((bh, Sk, D), lambda i: (i, 0, 0)),
                  pl.BlockSpec((bh, Sk, D), lambda i: (i, 0, 0))],
        out_specs=pl.BlockSpec((bh, Sq, D), lambda i: (i, 0, 0)),
        compiler_params=pltpu.CompilerParams(
            dimension_semantics=("parallel",),
            vmem_limit_bytes=_VMEM_LIMIT),
    )(qb, kb, vb)


def _gn_kernel(x_ref, g_ref, b_ref, gmap_ref, o_ref, *, eps, act):
    x = x_ref[0]                       # (HW, C) f32, channels lane-dense
    gmap = gmap_ref[...]               # (G, C) one-hot group membership
    hw = x.shape[0]
    cg = x.shape[1] // gmap.shape[0]
    n = float(hw * cg)
    s1 = jnp.sum(x, axis=0, keepdims=True)                       # (1, C)
    gsum = jax.lax.dot_general(s1, gmap, (((1,), (1,)), ((), ())),
                               preferred_element_type=jnp.float32)  # (1, G)
    mean_g = gsum / n
    mean_c = jnp.dot(mean_g, gmap, preferred_element_type=jnp.float32)  # (1, C)
    d = x - mean_c
    s2 = jnp.sum(d * d, axis=0, keepdims=True)                   # (1, C)
    gvar = jax.lax.dot_general(s2, gmap, (((1,), (1,)), ((), ())),
                               preferred_element_type=jnp.float32) / n
    inv_g = jax.lax.rsqrt(gvar + eps)
    inv_c = jnp.dot(inv_g, gmap, preferred_element_type=jnp.float32)    # (1, C)
    y = d * inv_c * g_ref[...] + b_ref[...]
    if act == "silu":
        y = y * jax.nn.sigmoid(y)
    o_ref[0] = y


@functools.partial(jax.jit, static_argnames=("eps", "act"))
def pallas_group_norm(x, gamma, beta, gmap, eps, act="none"):
    """x: (B, H, W, C) NHWC; per-(batch, group-of-32) normalization (+fused SiLU)."""
    B, H, W, C = x.shape
    HW = H * W
    G = gmap.shape[0]
    xr = x.reshape(B, HW, C)
    out = pl.pallas_call(
        functools.partial(_gn_kernel, eps=eps, act=act),
        out_shape=jax.ShapeDtypeStruct((B, HW, C), jnp.float32),
        grid=(B,),
        in_specs=[pl.BlockSpec((1, HW, C), lambda b: (b, 0, 0)),
                  pl.BlockSpec((1, C), lambda b: (0, 0)),
                  pl.BlockSpec((1, C), lambda b: (0, 0)),
                  pl.BlockSpec((G, C), lambda b: (0, 0))],
        out_specs=pl.BlockSpec((1, HW, C), lambda b: (b, 0, 0)),
        compiler_params=pltpu.CompilerParams(
            dimension_semantics=("parallel",),
            vmem_limit_bytes=_VMEM_LIMIT),
    )(xr, gamma, beta, gmap)
    return out.reshape(B, H, W, C)


def _ln_kernel(x_ref, g_ref, b_ref, o_ref, *, eps):
    x = x_ref[0]                       # (S, C)
    mean = jnp.mean(x, axis=-1, keepdims=True)
    d = x - mean
    var = jnp.mean(d * d, axis=-1, keepdims=True)
    o_ref[0] = d * jax.lax.rsqrt(var + eps) * g_ref[...] + b_ref[...]


@functools.partial(jax.jit, static_argnames=("eps",))
def pallas_layer_norm(x, gamma, beta, eps):
    """x: (B, S, C), normalize over C (lane-dense)."""
    B, S, C = x.shape
    return pl.pallas_call(
        functools.partial(_ln_kernel, eps=eps),
        out_shape=jax.ShapeDtypeStruct((B, S, C), jnp.float32),
        grid=(B,),
        in_specs=[pl.BlockSpec((1, S, C), lambda b: (b, 0, 0)),
                  pl.BlockSpec((1, C), lambda b: (0, 0)),
                  pl.BlockSpec((1, C), lambda b: (0, 0))],
        out_specs=pl.BlockSpec((1, S, C), lambda b: (b, 0, 0)),
        compiler_params=pltpu.CompilerParams(
            dimension_semantics=("parallel",),
            vmem_limit_bytes=_VMEM_LIMIT),
    )(x, gamma, beta)


# ----------------------------------------------------------------------------
# Deterministic parameter construction (weights pre-padded & pre-laid-out, bf16)
# ----------------------------------------------------------------------------
_rng = np.random.default_rng(0)


def init_linear(din, dout, bias=True):
    kp, npad = _round_up(din, 128), _round_up(dout, 128)
    w = np.zeros((kp, npad), np.float32)
    w[:din, :dout] = (_rng.standard_normal(size=(din, dout), dtype=np.float32)
                      * (0.2 / math.sqrt(din)))
    # biases start at zero (PyTorch default init is irrelevant to structure);
    # bias=False layers just keep a zero bias -> identical math.
    return {"w": jnp.asarray(w, jnp.bfloat16),
            "b": jnp.zeros((1, npad), jnp.float32),
            "n": dout}


def init_conv(cin, cout, k):
    K = cin * k * k
    kp, npad = _round_up(K, 128), _round_up(cout, 128)
    w = (_rng.standard_normal(size=(cout, cin, k, k), dtype=np.float32)
         * (0.2 / math.sqrt(K)))
    w_mat = np.transpose(w, (2, 3, 1, 0)).reshape(K, cout)   # (kh,kw,cin)->rows
    wp = np.zeros((kp, npad), np.float32)
    wp[:K, :cout] = w_mat
    return {"w": jnp.asarray(wp, jnp.bfloat16),
            "b": jnp.zeros((1, npad), jnp.float32),
            "n": cout, "kh": k, "kw": k}


def init_norm(c, groups=32):
    gmap = None
    if c % groups == 0:
        cg = c // groups
        g = np.zeros((groups, c), np.float32)
        for gi in range(groups):
            g[gi, gi * cg:(gi + 1) * cg] = 1.0
        gmap = jnp.asarray(g)
    return {"g": jnp.ones((1, c), jnp.float32),
            "b": jnp.zeros((1, c), jnp.float32),
            "gmap": gmap}


def linear(p, x2d, act="none"):
    return pallas_matmul_fused(x2d, p["w"], p["b"], n_orig=p["n"], act=act)


def conv2d(p, x, stride=1, padding=0, act="none"):
    """x: (B, H, W, C) NHWC. 1x1 convs are plain matmuls; 3x3 via lane-dense im2col."""
    B, H, W, C = x.shape
    kh, kw = p["kh"], p["kw"]
    if kh == 1 and kw == 1 and stride == 1 and padding == 0:
        Ho, Wo = H, W
        col = x.reshape(B * H * W, C)
    else:
        xp = jnp.pad(x, ((0, 0), (padding, padding), (padding, padding), (0, 0)))
        Ho = (H + 2 * padding - kh) // stride + 1
        Wo = (W + 2 * padding - kw) // stride + 1
        cols = []
        for i in range(kh):
            for j in range(kw):
                cols.append(xp[:, i:i + stride * Ho:stride,
                               j:j + stride * Wo:stride, :])
        col = jnp.stack(cols, axis=3).reshape(B * Ho * Wo, kh * kw * C)
    y = pallas_matmul_fused(col, p["w"], p["b"], n_orig=p["n"], act=act)
    return y.reshape(B, Ho, Wo, p["n"])


# ----------------------------------------------------------------------------
# Attention modules (selfAttention / crossAttention)
# ----------------------------------------------------------------------------
def _split_heads(t, B, S, h, dh):
    return t.reshape(B, S, h, dh).transpose(0, 2, 1, 3).reshape(B * h, S, dh)


def _merge_heads(t, B, S, h, dh):
    return t.reshape(B, h, S, dh).transpose(0, 2, 1, 3).reshape(B, S, h * dh)


def init_self_attention(n_heads, d_embed):
    return {"n_heads": n_heads,
            "in_proj": init_linear(d_embed, 3 * d_embed, bias=False),
            "out_proj": init_linear(d_embed, d_embed, bias=True)}


def self_attention(p, x):
    B, S, C = x.shape
    h = p["n_heads"]
    dh = C // h
    qkv = linear(p["in_proj"], x.reshape(B * S, C)).reshape(B, S, 3 * C)
    q, k, v = jnp.split(qkv, 3, axis=-1)
    o = pallas_attention(_split_heads(q, B, S, h, dh),
                         _split_heads(k, B, S, h, dh),
                         _split_heads(v, B, S, h, dh),
                         scale=1.0 / math.sqrt(dh))
    o = _merge_heads(o, B, S, h, dh)
    return linear(p["out_proj"], o.reshape(B * S, C)).reshape(B, S, C)


def init_cross_attention(n_heads, d_embed, d_cross):
    return {"n_heads": n_heads,
            "q_proj": init_linear(d_embed, d_embed, bias=False),
            "k_proj": init_linear(d_cross, d_embed, bias=False),
            "v_proj": init_linear(d_cross, d_embed, bias=False),
            "out_proj": init_linear(d_embed, d_embed, bias=True)}


def cross_attention(p, x, y):
    B, S, C = x.shape
    _, Sy, Cy = y.shape
    h = p["n_heads"]
    dh = C // h
    q = linear(p["q_proj"], x.reshape(B * S, C)).reshape(B, S, C)
    k = linear(p["k_proj"], y.reshape(B * Sy, Cy)).reshape(B, Sy, C)
    v = linear(p["v_proj"], y.reshape(B * Sy, Cy)).reshape(B, Sy, C)
    o = pallas_attention(_split_heads(q, B, S, h, dh),
                         _split_heads(k, B, Sy, h, dh),
                         _split_heads(v, B, Sy, h, dh),
                         scale=1.0 / math.sqrt(dh))
    o = _merge_heads(o, B, S, h, dh)
    return linear(p["out_proj"], o.reshape(B * S, C)).reshape(B, S, C)


# ----------------------------------------------------------------------------
# UNet blocks (activations NHWC)
# ----------------------------------------------------------------------------
def init_res_block(cin, cout, n_time=1280):
    return {"gn1": init_norm(cin),
            "conv1": init_conv(cin, cout, 3),
            "lin_time": init_linear(n_time, cout),
            "gn2": init_norm(cout),
            "conv2": init_conv(cout, cout, 3),
            "res": init_conv(cin, cout, 1) if cin != cout else None}


def res_block(p, feature, time_emb):
    residue = feature
    f = pallas_group_norm(feature, p["gn1"]["g"], p["gn1"]["b"], p["gn1"]["gmap"],
                          eps=1e-5, act="silu")
    f = conv2d(p["conv1"], f, stride=1, padding=1)
    t = jax.nn.silu(time_emb)                                  # (B, 1280) glue
    t = linear(p["lin_time"], t)                               # (B, cout)
    merged = f + t[:, None, None, :]
    merged = pallas_group_norm(merged, p["gn2"]["g"], p["gn2"]["b"], p["gn2"]["gmap"],
                               eps=1e-5, act="silu")
    merged = conv2d(p["conv2"], merged, stride=1, padding=1)
    if p["res"] is not None:
        residue = conv2d(p["res"], residue, stride=1, padding=0)
    return merged + residue


def init_attn_block(n_heads, n_embed, d_prompt=768):
    c = n_heads * n_embed
    return {"gn": init_norm(c),
            "conv_in": init_conv(c, c, 1),
            "ln1": init_norm(c), "attn1": init_self_attention(n_heads, c),
            "ln2": init_norm(c), "attn2": init_cross_attention(n_heads, c, d_prompt),
            "ln3": init_norm(c),
            "lin_gelu1": init_linear(c, 8 * c),
            "lin_gelu2": init_linear(4 * c, c),
            "conv_out": init_conv(c, c, 1)}


def attn_block(p, x, prompt):
    residue_end = x
    x = pallas_group_norm(x, p["gn"]["g"], p["gn"]["b"], p["gn"]["gmap"],
                          eps=1e-6, act="none")
    x = conv2d(p["conv_in"], x, stride=1, padding=0)           # 1x1 -> matmul
    B, H, W, C = x.shape
    x = x.reshape(B, H * W, C)                                 # free in NHWC
    r = x
    x = pallas_layer_norm(x, p["ln1"]["g"], p["ln1"]["b"], eps=1e-5)
    x = self_attention(p["attn1"], x)
    x = x + r
    r = x
    x = pallas_layer_norm(x, p["ln2"]["g"], p["ln2"]["b"], eps=1e-5)
    x = cross_attention(p["attn2"], x, prompt)
    x = x + r
    r = x
    x = pallas_layer_norm(x, p["ln3"]["g"], p["ln3"]["b"], eps=1e-5)
    hg = linear(p["lin_gelu1"], x.reshape(B * H * W, C)).reshape(B, H * W, 8 * C)
    h_, gate = jnp.split(hg, 2, axis=-1)
    x = h_ * jax.nn.gelu(gate, approximate=False)              # GEGLU glue
    x = linear(p["lin_gelu2"], x.reshape(B * H * W, 4 * C)).reshape(B, H * W, C)
    x = x + r
    x = x.reshape(B, H, W, C)
    return conv2d(p["conv_out"], x, stride=1, padding=0) + residue_end


def upsample(p, x):
    x = jnp.repeat(jnp.repeat(x, 2, axis=1), 2, axis=2)        # nearest, scale 2
    return conv2d(p, x, stride=1, padding=1)


# ----------------------------------------------------------------------------
# UNET wiring
# ----------------------------------------------------------------------------
def L_conv(cin, cout, stride=1):
    return {"kind": "conv", "p": init_conv(cin, cout, 3), "stride": stride}


def L_res(cin, cout):
    return {"kind": "res", "p": init_res_block(cin, cout)}


def L_attn(h, e):
    return {"kind": "attn", "p": init_attn_block(h, e)}


def L_up(c):
    return {"kind": "up", "p": init_conv(c, c, 3)}


def apply_layer(layer, x, prompt, time):
    kind = layer["kind"]
    if kind == "conv":
        return conv2d(layer["p"], x, stride=layer["stride"], padding=1)
    if kind == "res":
        return res_block(layer["p"], x, time)
    if kind == "attn":
        return attn_block(layer["p"], x, prompt)
    if kind == "up":
        return upsample(layer["p"], x)
    raise ValueError(kind)


def apply_sequential(layers, x, prompt, time):
    for layer in layers:
        x = apply_layer(layer, x, prompt, time)
    return x


def build_unet():
    encoders = [
        [L_conv(4, 320)],
        [L_res(320, 320), L_attn(8, 40)],
        [L_res(320, 320), L_attn(8, 40)],
        [L_conv(320, 320, stride=2)],
        [L_res(320, 640), L_attn(8, 80)],
        [L_res(640, 640), L_attn(8, 80)],
        [L_conv(640, 640, stride=2)],
        [L_res(640, 1280), L_attn(8, 160)],
        [L_res(1280, 1280), L_attn(8, 160)],
        [L_conv(1280, 1280, stride=2)],
        [L_res(1280, 1280)],
        [L_res(1280, 1280)],
    ]
    bottleneck = [L_res(1280, 1280), L_attn(8, 160), L_res(1280, 1280)]
    decoders = [
        [L_res(2560, 1280)],
        [L_res(2560, 1280)],
        [L_res(2560, 1280), L_up(1280)],
        [L_res(2560, 1280), L_attn(8, 160)],
        [L_res(2560, 1280), L_attn(8, 160)],
        [L_res(1920, 1280), L_attn(8, 160), L_up(1280)],
        [L_res(1920, 640), L_attn(8, 80)],
        [L_res(1280, 640), L_attn(8, 80)],
        [L_res(960, 640), L_attn(8, 80), L_up(640)],
        [L_res(960, 320), L_attn(8, 40)],
        [L_res(640, 320), L_attn(8, 40)],
        [L_res(640, 320), L_attn(8, 40)],
    ]
    return {"encoders": encoders, "bottleneck": bottleneck, "decoders": decoders}


def unet_forward(p, x, prompt, time):
    skips = []
    for layers in p["encoders"]:
        x = apply_sequential(layers, x, prompt, time)
        skips.append(x)
    x = apply_sequential(p["bottleneck"], x, prompt, time)
    for layers in p["decoders"]:
        x = jnp.concatenate((x, skips.pop()), axis=-1)         # channel concat (NHWC)
        x = apply_sequential(layers, x, prompt, time)
    return x


# ----------------------------------------------------------------------------
# Diffusion = timeEmbedding + UNET + UNET_OutputLayer
# ----------------------------------------------------------------------------
def build_diffusion():
    return {
        "time_embedding": {"linear_1": init_linear(320, 1280),
                           "linear_2": init_linear(1280, 1280)},
        "unet": build_unet(),
        "final": {"gn": init_norm(320), "conv": init_conv(320, 4, 3)},
    }


def time_embedding(p, t):
    t = linear(p["linear_1"], t, act="silu")     # fused bias + SiLU epilogue
    return linear(p["linear_2"], t)


def final_layer(p, x):
    x = pallas_group_norm(x, p["gn"]["g"], p["gn"]["b"], p["gn"]["gmap"],
                          eps=1e-5, act="silu")
    return conv2d(p["conv"], x, stride=1, padding=1)


def diffusion_forward(params, latent_nchw, prompt, t):
    t = time_embedding(params["time_embedding"], t)            # (B, 1280)
    x = jnp.transpose(latent_nchw, (0, 2, 3, 1))               # NCHW -> NHWC
    x = unet_forward(params["unet"], x, prompt, t)             # (B, H, W, 320)
    x = final_layer(params["final"], x)                        # (B, H, W, 4)
    return jnp.transpose(x, (0, 3, 1, 2))                      # back to NCHW


# ----------------------------------------------------------------------------
# Main
# ----------------------------------------------------------------------------
if __name__ == "__main__":
    params = build_diffusion()

    key = jax.random.PRNGKey(0)
    k1, k2, k3 = jax.random.split(key, 3)
    latent = jax.random.normal(k1, (1, 4, 8, 8), jnp.float32)      # NCHW latent
    prompt = jax.random.normal(k2, (1, 8, 768), jnp.float32)       # (B, S, d_prompt)
    time_in = jax.random.normal(k3, (1, 320), jnp.float32)         # (B, 320)

    out = diffusion_forward(params, latent, prompt, time_in)
    out = jax.block_until_ready(out)

    assert out.shape == (1, 4, 8, 8), out.shape
    assert bool(jnp.all(jnp.isfinite(out)))
    print("KERNEL_OK")
</pallas_src>

<mosaic_0001>
module attributes {stable_mosaic.version = 11 : i64} {
  func.func @_matmul_kernel(%arg0: i32, %arg1: i32, %arg2: memref<1x384xbf16, #tpu.memory_space<vmem>>, %arg3: memref<384x256xbf16, #tpu.memory_space<vmem>>, %arg4: memref<1x256xf32, #tpu.memory_space<vmem>>, %arg5: memref<1x256xf32, #tpu.memory_space<vmem>>) attributes {dimension_semantics = [#tpu.dimension_semantics<parallel>, #tpu.dimension_semantics<arbitrary>], iteration_bounds = array<i64: 5, 1>, scalar_prefetch = 0 : i64, scratch_operands = 0 : i64, tpu.core_type = #tpu.core_type<tc>, window_params = [{transform_indices = @transform_0, window_bounds = array<i64: 1, 384>}, {transform_indices = @transform_1, window_bounds = array<i64: 384, 256>}, {transform_indices = @transform_2, window_bounds = array<i64: 1, 256>}, {transform_indices = @transform_3, window_bounds = array<i64: 1, 256>}]} {
    %c0_i32 = arith.constant 0 : i32
    %0 = arith.cmpi eq, %arg1, %c0_i32 : i32
    %1 = arith.extui %0 : i1 to i32
    %c0_i32_0 = arith.constant 0 : i32
    %2 = arith.cmpi ne, %1, %c0_i32_0 : i32
    scf.if %2 {
      %cst_10 = arith.constant 0.000000e+00 : f32
      %12 = vector.broadcast %cst_10 : f32 to vector<1x256xf32>
      %c0_11 = arith.constant 0 : index
      %c0_12 = arith.constant 0 : index
      %13 = vector.load %arg5[%c0_11, %c0_12] : memref<1x256xf32, #tpu.memory_space<vmem>>, vector<1x256xf32>
      tpu.vector_store %arg5[%c0_11, %c0_12], %12 {strides = array<i32>} : memref<1x256xf32, #tpu.memory_space<vmem>>, vector<1x256xf32>,
    } else {
    }
    %c0 = arith.constant 0 : index
    %c0_1 = arith.constant 0 : index
    %3 = vector.load %arg5[%c0, %c0_1] : memref<1x256xf32, #tpu.memory_space<vmem>>, vector<1x256xf32>
    %c0_2 = arith.constant 0 : index
    %c0_3 = arith.constant 0 : index
    %4 = vector.load %arg2[%c0_2, %c0_3] : memref<1x384xbf16, #tpu.memory_space<vmem>>, vector<1x384xbf16>
    %c0_4 = arith.constant 0 : index
    %c0_5 = arith.constant 0 : index
    %5 = vector.load %arg3[%c0_4, %c0_5] : memref<384x256xbf16, #tpu.memory_space<vmem>>, vector<384x256xbf16>
    %cst = arith.constant dense<0.000000e+00> : vector<1x256xf32>
    %6 = tpu.matmul %4, %5, %cst {dimension_numbers = #tpu.dot_dimension_numbers<[1], [0], [0], [1], [0, 0, 1, 1], [], []>} : vector<1x384xbf16>, vector<384x256xbf16>, vector<1x256xf32> -> vector<1x256xf32>
    %7 = arith.addf %3, %6 : vector<1x256xf32>
    %c0_6 = arith.constant 0 : index
    %c0_7 = arith.constant 0 : index
    %8 = vector.load %arg5[%c0_6, %c0_7] : memref<1x256xf32, #tpu.memory_space<vmem>>, vector<1x256xf32>
    tpu.vector_store %arg5[%c0_6, %c0_7], %7 {strides = array<i32>} : memref<1x256xf32, #tpu.memory_space<vmem>>, vector<1x256xf32>,
    %c0_i32_8 = arith.constant 0 : i32
    %9 = arith.cmpi eq, %arg1, %c0_i32_8 : i32
    %10 = arith.extui %9 : i1 to i32
    %c0_i32_9 = arith.constant 0 : i32
    %11 = arith.cmpi ne, %10, %c0_i32_9 : i32
    scf.if %11 {
      %c0_10 = arith.constant 0 : index
      %c0_11 = arith.constant 0 : index
      %12 = vector.load %arg5[%c0_10, %c0_11] : memref<1x256xf32, #tpu.memory_space<vmem>>, vector<1x256xf32>
      %c0_12 = arith.constant 0 : index
      %c0_13 = arith.constant 0 : index
      %13 = vector.load %arg4[%c0_12, %c0_13] : memref<1x256xf32, #tpu.memory_space<vmem>>, vector<1x256xf32>
      %14 = arith.addf %12, %13 : vector<1x256xf32>
      %15 = arith.negf %14 : vector<1x256xf32>
      %16 = math.exp %15 : vector<1x256xf32>
      %cst_14 = arith.constant 1.000000e+00 : f32
      %17 = vector.broadcast %cst_14 : f32 to vector<1x256xf32>
      %18 = arith.addf %17, %16 : vector<1x256xf32>
      %19 = arith.divf %17, %18 : vector<1x256xf32>
      %20 = arith.mulf %14, %19 : vector<1x256xf32>
      %c0_15 = arith.constant 0 : index
      %c0_16 = arith.constant 0 : index
      %21 = vector.load %arg5[%c0_15, %c0_16] : memref<1x256xf32, #tpu.memory_space<vmem>>, vector<1x256xf32>
      tpu.vector_store %arg5[%c0_15, %c0_16], %20 {strides = array<i32>} : memref<1x256xf32, #tpu.memory_space<vmem>>, vector<1x256xf32>,
    } else {
    }
    return
  }
  func.func @transform_0(%arg0: i32, %arg1: i32) -> (i32, i32) {
    %c0_i32 = arith.constant 0 : i32
    %c0_i32_0 = arith.constant 0 : i32
    return %c0_i32, %arg1 : i32, i32
  }
  func.func @transform_1(%arg0: i32, %arg1: i32) -> (i32, i32) {
    %c0_i32 = arith.constant 0 : i32
    return %arg1, %arg0 : i32, i32
  }
  func.func @transform_2(%arg0: i32, %arg1: i32) -> (i32, i32) {
    %c0_i32 = arith.constant 0 : i32
    %c0_i32_0 = arith.constant 0 : i32
    return %c0_i32, %arg0 : i32, i32
  }
  func.func @transform_3(%arg0: i32, %arg1: i32) -> (i32, i32) {
    %c0_i32 = arith.constant 0 : i32
    %c0_i32_0 = arith.constant 0 : i32
    return %c0_i32, %arg0 : i32, i32
  }
}

</mosaic_0001>

<llo_original>
// kernel: pallas_matmul_fused.1
$region0: #{pallas_matmul_fused.1}
  #allocation0 [shape = 'u32[]', space=smem, size = 0x4, offset = 0x4, fixed_abs, tag = 'smem constant byte address 0x4 - core index']
  #allocation1 [shape = 'u32[72,128]{1,0:T(1,128)}', space=vmem, size = 0x9000, scoped, tag = 'internal scratch']
  %s0 = inlined_call_operand.vmem [shape: bf16[1,384], index: 0, kind: input, shape index: {}]
  %s1 = inlined_call_operand.hbm [shape: bf16[384,1280], index: 1, kind: input, shape index: {}]
  %s2 = inlined_call_operand.vmem [shape: f32[1,1280], index: 2, kind: input, shape index: {}]
  %s3 = inlined_call_operand.hbm [shape: f32[1,1280], index: 3, kind: output, shape index: {}]
  %s4 = sld [smem:[#allocation0]]
  $region57: #{pallas_matmul_fused.1} parent=0
    _
  %s6 = ssub.s32 1, %s4
  %s7 = scalar_select 0, %s6, %s4
  $region1: #{pallas_matmul_fused.1} parent=0
    #allocation2 [shape = 'u8[393216]{0}', space=vmem, size = 0x60000, scoped, tag = 'input window, operand 1']
    #allocation3 [shape = 's32[2]{0}', space=sflag, size = 0x8, scoped, tag = 'scoped memory for pallas_matmul_fused.1']
    #allocation4 [shape = 's32[2]{0}', space=sflag, size = 0x8, scoped, tag = 'scoped memory for pallas_matmul_fused.1']
    #allocation5 [shape = 'u8[2048]{0}', space=vmem, size = 0x800, scoped, tag = 'output window, operand 0']
    %8 = vsyncpa [#allocation3], 0
    %s9 = scalar_lea.sflag [#allocation3], 1
    %10 = vsyncpa %s9, 0
    %11 = vsyncpa [#allocation4], 0
    %s12 = scalar_lea.sflag [#allocation4], 1
    %13 = vsyncpa %s12, 0
    loop: start=0, step=1, limit=7
    $region2: #{pallas_matmul_fused.1} parent=1 // loop_pre_header
      _
    $region3: #{pallas_matmul_fused.1} parent=1 // loop_header
      %s15 = sphi 0, %s19
      %p16 = scmp.ge.s32.totalorder %s15, 7
      %s22 = sphi 0, %s34
      %s23 = sphi 0, %s30
      %s24 = sphi 0, %s22
      %s25 = sphi 0, %s23
      %s26 = sphi 0, %s24
      %s27 = sphi 0, %s25
      %s37 = sphi 0, %s39
      %s40 = sphi 0, %s37
      %s41 = sphi 0, %s40
      %s57 = sphi 0, %s41
      %s65 = sphi 0, %s67
      %s68 = sphi 0, %s65
      %s69 = sphi 0, %s68
      %s85 = sphi 0, %s69
      %s91 = sphi 0, %s93
      %s94 = sphi 0, %s91
      %s95 = sphi 0, %s94
      %s111 = sphi 0, %s95
      %s117 = sphi 0, %s119
      %s120 = sphi 0, %s117
      %s121 = sphi 0, %s120
      %s137 = sphi 0, %s121
    $region4: #{pallas_matmul_fused.1} parent=1 // loop_header_branch
      %18 = sbr.rel (%p16) target = $region8
    $region5: #{pallas_matmul_fused.1} parent=1 // loop_body
      %s20 = ssub.s32 %s15, 1
      %s21 = ssub.s32 %s15, 2
      %s28 = sadd.s32 1, %s23
      %p29 = scmp.ge.s32.totalorder %s28, 1
      %s30 = scalar_select %p29, 0, %s28
      %s31 = sadd.s32 1, %s22
      %s32 = scalar_select %p29, %s31, %s22
      %p33 = scmp.ge.s32.totalorder %s32, 5
      %s34 = scalar_select %p33, 0, %s32
      %s35 = ssub.s32 %s23, %s30
      %p36 = scmp.eq.s32.totalorder %s35, 0
      %s38 = sadd.s32 %s37, 1
      %s39 = scalar_select %p36, %s37, %s38
      %p42 = pneg %p36
      %p43 = scmp.eq.s32.totalorder %s15, 4
      %p44 = por %p42, %p43
      %p45 = scmp.ne.s32.totalorder %s37, %s40
      %p46 = scmp.eq.s32.totalorder %s15, 0
      %p47 = por %p45, %p46
      %p48 = scmp.ne.s32.totalorder %s37, %s40
      %p49 = scmp.eq.s32.totalorder %s20, 4
      %p50 = por %p48, %p49
      %p51 = scmp.ne.s32.totalorder %s40, %s41
      %p52 = scmp.eq.s32.totalorder %s20, 0
      %p53 = por %p51, %p52
      %p54 = scmp.ne.s32.totalorder %s40, %s41
      %p55 = scmp.eq.s32.totalorder %s21, 4
      %p56 = por %p54, %p55
      %p58 = scmp.ne.s32.totalorder %s41, %s57
      %p59 = scmp.eq.s32.totalorder %s21, 0
      %p60 = por %p58, %p59
      %s61 = ssub.s32 %s23, %s30
      %s62 = ssub.s32 %s22, %s34
      %s63 = sor.u32 %s61, %s62
      %p64 = scmp.eq.s32.totalorder %s63, 0
      %s66 = sadd.s32 %s65, 1
      %s67 = scalar_select %p64, %s65, %s66
      %p70 = pneg %p64
      %p71 = scmp.eq.s32.totalorder %s15, 4
      %p72 = por %p70, %p71
      %p73 = scmp.ne.s32.totalorder %s65, %s68
      %p74 = scmp.eq.s32.totalorder %s15, 0
      %p75 = por %p73, %p74
      %p76 = scmp.ne.s32.totalorder %s65, %s68
      %p77 = scmp.eq.s32.totalorder %s20, 4
      %p78 = por %p76, %p77
      %p79 = scmp.ne.s32.totalorder %s68, %s69
      %p80 = scmp.eq.s32.totalorder %s20, 0
      %p81 = por %p79, %p80
      %p82 = scmp.ne.s32.totalorder %s68, %s69
      %p83 = scmp.eq.s32.totalorder %s21, 4
      %p84 = por %p82, %p83
      %p86 = scmp.ne.s32.totalorder %s69, %s85
      %p87 = scmp.eq.s32.totalorder %s21, 0
      %p88 = por %p86, %p87
      %s89 = ssub.s32 %s22, %s34
      %p90 = scmp.eq.s32.totalorder %s89, 0
      %s92 = sadd.s32 %s91, 1
      %s93 = scalar_select %p90, %s91, %s92
      %p96 = pneg %p90
      %p97 = scmp.eq.s32.totalorder %s15, 4
      %p98 = por %p96, %p97
      %p99 = scmp.ne.s32.totalorder %s91, %s94
      %p100 = scmp.eq.s32.totalorder %s15, 0
      %p101 = por %p99, %p100
      %p102 = scmp.ne.s32.totalorder %s91, %s94
      %p103 = scmp.eq.s32.totalorder %s20, 4
      %p104 = por %p102, %p103
      %p105 = scmp.ne.s32.totalorder %s94, %s95
      %p106 = scmp.eq.s32.totalorder %s20, 0
      %p107 = por %p105, %p106
      %p108 = scmp.ne.s32.totalorder %s94, %s95
      %p109 = scmp.eq.s32.totalorder %s21, 4
      %p110 = por %p108, %p109
      %p112 = scmp.ne.s32.totalorder %s95, %s111
      %p113 = scmp.eq.s32.totalorder %s21, 0
      %p114 = por %p112, %p113
      %s115 = ssub.s32 %s22, %s34
      %p116 = scmp.eq.s32.totalorder %s115, 0
      %s118 = sadd.s32 %s117, 1
      %s119 = scalar_select %p116, %s117, %s118
      %p122 = pneg %p116
      %p123 = scmp.eq.s32.totalorder %s15, 4
      %p124 = por %p122, %p123
      %p125 = scmp.ne.s32.totalorder %s117, %s120
      %p126 = scmp.eq.s32.totalorder %s15, 0
      %p127 = por %p125, %p126
      %p128 = scmp.ne.s32.totalorder %s117, %s120
      %p129 = scmp.eq.s32.totalorder %s20, 4
      %p130 = por %p128, %p129
      %p131 = scmp.ne.s32.totalorder %s120, %s121
      %p132 = scmp.eq.s32.totalorder %s20, 0
      %p133 = por %p131, %p132
      %p134 = scmp.ne.s32.totalorder %s120, %s121
      %p135 = scmp.eq.s32.totalorder %s21, 4
      %p136 = por %p134, %p135
      %p138 = scmp.ne.s32.totalorder %s121, %s137
      %p139 = scmp.eq.s32.totalorder %s21, 0
      %p140 = por %p138, %p139
      %p141 = scmp.le.s32.totalorder 1, %s15
      %p142 = scmp.lt.s32.totalorder %s15, 6
      %p143 = pnand %p141, %p142
      %p144 = pneg %p143
      // Predicated region
      $region9: #{pallas_matmul_fused.1} parent=5 // pred_check
        _
      $region10: #{pallas_matmul_fused.1} parent=5 // pred_check_branch
        %146 = sbr.rel (%p143) target = $region12
      $region11: #{pallas_matmul_fused.1} parent=5 // pred_region
        %s147 = ssub.s32 %s15, 1
        // Predicated region
        $region13: #{pallas_matmul_fused.1} parent=11 // pred_check
          %p148 = pneg %p53
        $region14: #{pallas_matmul_fused.1} parent=11 // pred_check_branch
          %150 = sbr.rel (%p148) target = $region16
        $region15: #{pallas_matmul_fused.1} parent=11 // pred_region
          %s151 = smul.u32 3, %s25
          %p152 = scmp.lt.s32.totalorder %s151, 2
          %s153 = scalar_select %p152, %s151, 2
          %s154 = scalar_lea.vmem %s0, %s153
          %s155 = smul.u32 3, %s25
        $region16: #{pallas_matmul_fused.1} parent=11 // pred_fallthru
          _
      $region12: #{pallas_matmul_fused.1} parent=5 // pred_fallthru
        _
      %p156 = scmp.lt.s32.totalorder %s15, 5
      // Predicated region
      $region17: #{pallas_matmul_fused.1} parent=5 // pred_check
        %p157 = pneg %p156
      $region18: #{pallas_matmul_fused.1} parent=5 // pred_check_branch
        %159 = sbr.rel (%p157) target = $region20
      $region19: #{pallas_matmul_fused.1} parent=5 // pred_region
        // Predicated region
        $region21: #{pallas_matmul_fused.1} parent=19 // pred_check
          %p160 = pneg %p75
        $region22: #{pallas_matmul_fused.1} parent=19 // pred_check_branch
          %162 = sbr.rel (%p160) target = $region24
        $region23: #{pallas_matmul_fused.1} parent=19 // pred_region
          %s163 = sand.u32 %s65, 1
          %s164 = scalar_lea.sflag [#allocation3], %s163
          %s165 = sand.u32 %s65, 1
          %s166 = smul.addr %s165, 384
          %s167 = scalar_lea.vmem [#allocation2], %s166
          %s168 = smul.u32 48, %s23
          %s169 = smul.u32 2, %s22
          %171 = vsyncadd %s164, 0
          %s172 = smul.addr %s168, 10
          %s173 = sadd.s32 %s169, %s172
          %s174 = smul.addr %s173, 4
          %s175 = scalar_lea.hbm %s1, %s174
          %s176 = sshll.u32 %s175, 4
          %s177 = int_to_ptr.hbm [resolvable:$true] %s176
          %s178 = sshll.u32 %s167, 4
          %s179 = int_to_ptr.vmem [resolvable:$true] %s178
          %184 = dma.hbm_to_vmem [thread:$0]  %s177, 6144, %s179, %s164, 640, 128, 8
        $region24: #{pallas_matmul_fused.1} parent=19 // pred_fallthru
          _
        // Predicated region
        $region25: #{pallas_matmul_fused.1} parent=19 // pred_check
          %p185 = pneg %p101
        $region26: #{pallas_matmul_fused.1} parent=19 // pred_check_branch
          %187 = sbr.rel (%p185) target = $region28
        $region27: #{pallas_matmul_fused.1} parent=19 // pred_region
          %s188 = smul.u32 2, %s22
          %p189 = scmp.lt.s32.totalorder %s188, 9
          %s190 = scalar_select %p189, %s188, 9
          %s191 = scalar_lea.vmem %s2, %s190
          %s192 = smul.u32 2, %s22
        $region28: #{pallas_matmul_fused.1} parent=19 // pred_fallthru
          _
      $region20: #{pallas_matmul_fused.1} parent=5 // pred_fallthru
        _
      %p193 = scmp.le.s32.totalorder 1, %s15
      %p194 = scmp.lt.s32.totalorder %s15, 6
      %p195 = pnand %p193, %p194
      %p196 = pneg %p195
      // Predicated region
      $region29: #{pallas_matmul_fused.1} parent=5 // pred_check
        _
      $region30: #{pallas_matmul_fused.1} parent=5 // pred_check_branch
        %198 = sbr.rel (%p195) target = $region32
      $region31: #{pallas_matmul_fused.1} parent=5 // pred_region
        %s199 = ssub.s32 %s15, 1
        %s200 = sand.u32 %s68, 1
        %s201 = scalar_lea.sflag [#allocation3], %s200
        %s202 = sand.u32 %s68, 1
        %s203 = smul.addr %s202, 384
        %s204 = scalar_lea.vmem [#allocation2], %s203
        // Predicated region
        $region33: #{pallas_matmul_fused.1} parent=31 // pred_check
          %p205 = pneg %p81
        $region34: #{pallas_matmul_fused.1} parent=31 // pred_check_branch
          %207 = sbr.rel (%p205) target = $region36
        $region35: #{pallas_matmul_fused.1} parent=31 // pred_region
          %209 = dma.done %s201, 6144
        $region36: #{pallas_matmul_fused.1} parent=31 // pred_fallthru
          _
        %s210 = smul.u32 3, %s25
        %p211 = scmp.lt.s32.totalorder %s210, 2
        %s212 = scalar_select %p211, %s210, 2
        %s213 = scalar_lea.vmem %s0, %s212
        %p214 = pneg %p53
        %p215 = pneg %p50
        %s216 = sand.u32 %s68, 1
        %s217 = scalar_lea.sflag [#allocation3], %s216
        %s218 = sand.u32 %s68, 1
        %s219 = smul.addr %s218, 384
        %s220 = scalar_lea.vmem [#allocation2], %s219
        %p221 = pneg %p81
        %p222 = pneg %p78
        %s223 = smul.u32 2, %s24
        %p224 = scmp.lt.s32.totalorder %s223, 9
        %s225 = scalar_select %p224, %s223, 9
        %s226 = scalar_lea.vmem %s2, %s225
        %p227 = pneg %p107
        %p228 = pneg %p104
        %p229 = pneg %p133
        %p230 = pneg %p130
        %s231 = sand.u32 %s120, 1
        %s232 = scalar_lea.sflag [#allocation4], %s231
        %s233 = sand.u32 %s120, 1
        %s234 = smul.addr %s233, 2
        %s235 = scalar_lea.vmem [#allocation5], %s234
        %s236 = smul.u32 3, %s25
        %p237 = scmp.lt.s32.totalorder %s236, 2
        %s238 = scalar_select %p237, %s236, 2
        %s239 = scalar_lea.vmem %s0, %s238
        %s240 = smul.u32 3, %s25
        %s241 = smul.u32 48, %s25
        %s242 = smul.u32 2, %s24
        %s243 = smul.u32 2, %s24
        %p244 = scmp.lt.s32.totalorder %s243, 9
        %s245 = scalar_select %p244, %s243, 9
        %s246 = scalar_lea.vmem %s2, %s245
        %s247 = smul.u32 2, %s24
        %s248 = smul.u32 2, %s24
        %p249 = scmp.eq.s32.totalorder %s25, 0
        // Predicated region
        $region37: #{pallas_matmul_fused.1} parent=31 // pred_check
          %p250 = pneg %p249
        $region38: #{pallas_matmul_fused.1} parent=31 // pred_check_branch
          %252 = sbr.rel (%p250) target = $region40
        $region39: #{pallas_matmul_fused.1} parent=31 // pred_region
          %v253 = vlaneseq
          %vm254 = vcmp.ge.s32.totalorder %v253, 0
          %vm255 = vcmp.lt.s32.totalorder %v253, 256
          %vm256 = vmand %vm254, %vm255
          %257 = vst.msk [vmem:[%s235] sm:$0x3] %vm256, 0.0
        $region40: #{pallas_matmul_fused.1} parent=31 // pred_fallthru
          _
        %v258 = vld [vmem:[%s235] sm:$0x3]
        %v259 = vld [vmem:[%s239] sm:$0x7]
        %v260 = vld [vmem:[%s204] sm:$0xff]
        %v261 = vld [vmem:[%s204 + $0x8] sm:$0xff]
        %v262 = vld [vmem:[%s204 + $0x10] sm:$0xff]
        %v263 = vld [vmem:[%s204 + $0x18] sm:$0xff]
        %v264 = vld [vmem:[%s204 + $0x20] sm:$0xff]
        %v265 = vld [vmem:[%s204 + $0x28] sm:$0xff]
        %v266 = vld [vmem:[%s204 + $0x30] sm:$0xff]
        %v267 = vld [vmem:[%s204 + $0x38] sm:$0xff]
        %v268 = vld [vmem:[%s204 + $0x40] sm:$0xff]
        %v269 = vld [vmem:[%s204 + $0x48] sm:$0xff]
        %v270 = vld [vmem:[%s204 + $0x50] sm:$0xff]
        %v271 = vld [vmem:[%s204 + $0x58] sm:$0xff]
        %v272 = vld [vmem:[%s204 + $0x60] sm:$0xff]
        %v273 = vld [vmem:[%s204 + $0x68] sm:$0xff]
        %v274 = vld [vmem:[%s204 + $0x70] sm:$0xff]
        %v275 = vld [vmem:[%s204 + $0x78] sm:$0xff]
        %v276 = vld [vmem:[%s204 + $0x80] sm:$0xff]
        %v277 = vld [vmem:[%s204 + $0x88] sm:$0xff]
        %v278 = vld [vmem:[%s204 + $0x90] sm:$0xff]
        %v279 = vld [vmem:[%s204 + $0x98] sm:$0xff]
        %v280 = vld [vmem:[%s204 + $0xa0] sm:$0xff]
        %v281 = vld [vmem:[%s204 + $0xa8] sm:$0xff]
        %v282 = vld [vmem:[%s204 + $0xb0] sm:$0xff]
        %v283 = vld [vmem:[%s204 + $0xb8] sm:$0xff]
        %v284 = vld [vmem:[%s204 + $0xc0] sm:$0xff]
        %v285 = vld [vmem:[%s204 + $0xc8] sm:$0xff]
        %v286 = vld [vmem:[%s204 + $0xd0] sm:$0xff]
        %v287 = vld [vmem:[%s204 + $0xd8] sm:$0xff]
        %v288 = vld [vmem:[%s204 + $0xe0] sm:$0xff]
        %v289 = vld [vmem:[%s204 + $0xe8] sm:$0xff]
        %v290 = vld [vmem:[%s204 + $0xf0] sm:$0xff]
        %v291 = vld [vmem:[%s204 + $0xf8] sm:$0xff]
        %v292 = vld [vmem:[%s204 + $0x100] sm:$0xff]
        %v293 = vld [vmem:[%s204 + $0x108] sm:$0xff]
        %v294 = vld [vmem:[%s204 + $0x110] sm:$0xff]
        %v295 = vld [vmem:[%s204 + $0x118] sm:$0xff]
        %v296 = vld [vmem:[%s204 + $0x120] sm:$0xff]
        %v297 = vld [vmem:[%s204 + $0x128] sm:$0xff]
        %v298 = vld [vmem:[%s204 + $0x130] sm:$0xff]
        %v299 = vld [vmem:[%s204 + $0x138] sm:$0xff]
        %v300 = vld [vmem:[%s204 + $0x140] sm:$0xff]
        %v301 = vld [vmem:[%s204 + $0x148] sm:$0xff]
        %v302 = vld [vmem:[%s204 + $0x150] sm:$0xff]
        %v303 = vld [vmem:[%s204 + $0x158] sm:$0xff]
        %v304 = vld [vmem:[%s204 + $0x160] sm:$0xff]
        %v305 = vld [vmem:[%s204 + $0x168] sm:$0xff]
        %v306 = vld [vmem:[%s204 + $0x170] sm:$0xff]
        %v307 = vld [vmem:[%s204 + $0x178] sm:$0xff]
        %309 = vst [vmem:[#allocation1] ss:$9 sm:$0xff] %v259
        %v310 = vld [vmem:[#allocation1] sm:$0xff]
        %v311 = vld [vmem:[#allocation1 + $0x9] sm:$0xff]
        %v312 = vld [vmem:[#allocation1 + $0x12] sm:$0xff]
        %v364 = vunpack.c.l.b16 %v260
        %v365 = vunpack.c.h.b16 %v260
        %v366 = vunpack.c.l.b16 %v261
        %v367 = vunpack.c.h.b16 %v261
        %v368 = vunpack.c.l.b16 %v262
        %v369 = vunpack.c.h.b16 %v262
        %v370 = vunpack.c.l.b16 %v263
        %v371 = vunpack.c.h.b16 %v263
        %v372 = vunpack.c.l.b16 %v264
        %v373 = vunpack.c.h.b16 %v264
        %v374 = vunpack.c.l.b16 %v265
        %v375 = vunpack.c.h.b16 %v265
        %v376 = vunpack.c.l.b16 %v266
        %v377 = vunpack.c.h.b16 %v266
        %v378 = vunpack.c.l.b16 %v267
        %v379 = vunpack.c.h.b16 %v267
        %v380 = vunpack.c.l.b16 %v268
        %v381 = vunpack.c.h.b16 %v268
        %v382 = vunpack.c.l.b16 %v269
        %v383 = vunpack.c.h.b16 %v269
        %v384 = vunpack.c.l.b16 %v270
        %v385 = vunpack.c.h.b16 %v270
        %v386 = vunpack.c.l.b16 %v271
        %v387 = vunpack.c.h.b16 %v271
        %v388 = vunpack.c.l.b16 %v272
        %v389 = vunpack.c.h.b16 %v272
        %v390 = vunpack.c.l.b16 %v273
        %v391 = vunpack.c.h.b16 %v273
        %v392 = vunpack.c.l.b16 %v274
        %v393 = vunpack.c.h.b16 %v274
        %v394 = vunpack.c.l.b16 %v275
        %v395 = vunpack.c.h.b16 %v275
        %v396 = vunpack.c.l.b16 %v276
        %v397 = vunpack.c.h.b16 %v276
        %v398 = vunpack.c.l.b16 %v277
        %v399 = vunpack.c.h.b16 %v277
        %v400 = vunpack.c.l.b16 %v278
        %v401 = vunpack.c.h.b16 %v278
        %v402 = vunpack.c.l.b16 %v279
        %v403 = vunpack.c.h.b16 %v279
        %v404 = vunpack.c.l.b16 %v280
        %v405 = vunpack.c.h.b16 %v280
        %v406 = vunpack.c.l.b16 %v281
        %v407 = vunpack.c.h.b16 %v281
        %v408 = vunpack.c.l.b16 %v282
        %v409 = vunpack.c.h.b16 %v282
        %v410 = vunpack.c.l.b16 %v283
        %v411 = vunpack.c.h.b16 %v283
        %v412 = vunpack.c.l.b16 %v284
        %v413 = vunpack.c.h.b16 %v284
        %v414 = vunpack.c.l.b16 %v285
        %v415 = vunpack.c.h.b16 %v285
        %v416 = vunpack.c.l.b16 %v286
        %v417 = vunpack.c.h.b16 %v286
        %v418 = vunpack.c.l.b16 %v287
        %v419 = vunpack.c.h.b16 %v287
        %v420 = vunpack.c.l.b16 %v288
        %v421 = vunpack.c.h.b16 %v288
        %v422 = vunpack.c.l.b16 %v289
        %v423 = vunpack.c.h.b16 %v289
        %v424 = vunpack.c.l.b16 %v290
        %v425 = vunpack.c.h.b16 %v290
        %v426 = vunpack.c.l.b16 %v291
        %v427 = vunpack.c.h.b16 %v291
        %v428 = vunpack.c.l.b16 %v292
        %v429 = vunpack.c.h.b16 %v292
        %v430 = vunpack.c.l.b16 %v293
        %v431 = vunpack.c.h.b16 %v293
        %v432 = vunpack.c.l.b16 %v294
        %v433 = vunpack.c.h.b16 %v294
        %v434 = vunpack.c.l.b16 %v295
        %v435 = vunpack.c.h.b16 %v295
        %v436 = vunpack.c.l.b16 %v296
        %v437 = vunpack.c.h.b16 %v296
        %v438 = vunpack.c.l.b16 %v297
        %v439 = vunpack.c.h.b16 %v297
        %v440 = vunpack.c.l.b16 %v298
        %v441 = vunpack.c.h.b16 %v298
        %v442 = vunpack.c.l.b16 %v299
        %v443 = vunpack.c.h.b16 %v299
        %v444 = vunpack.c.l.b16 %v300
        %v445 = vunpack.c.h.b16 %v300
        %v446 = vunpack.c.l.b16 %v301
        %v447 = vunpack.c.h.b16 %v301
        %v448 = vunpack.c.l.b16 %v302
        %v449 = vunpack.c.h.b16 %v302
        %v450 = vunpack.c.l.b16 %v303
        %v451 = vunpack.c.h.b16 %v303
        %v452 = vunpack.c.l.b16 %v304
        %v453 = vunpack.c.h.b16 %v304
        %v454 = vunpack.c.l.b16 %v305
        %v455 = vunpack.c.h.b16 %v305
        %v456 = vunpack.c.l.b16 %v306
        %v457 = vunpack.c.h.b16 %v306
        %v458 = vunpack.c.l.b16 %v307
        %v459 = vunpack.c.h.b16 %v307
        %v460 = vpack.c.b16 %v366, %v364
        %v461 = vpack.c.b16 %v367, %v365
        %v462 = vpack.c.b16 %v370, %v368
        %v463 = vpack.c.b16 %v371, %v369
        %v464 = vpack.c.b16 %v374, %v372
        %v465 = vpack.c.b16 %v375, %v373
        %v466 = vpack.c.b16 %v378, %v376
        %v467 = vpack.c.b16 %v379, %v377
        %v468 = vpack.c.b16 %v382, %v380
        %v469 = vpack.c.b16 %v383, %v381
        %v470 = vpack.c.b16 %v386, %v384
        %v471 = vpack.c.b16 %v387, %v385
        %v472 = vpack.c.b16 %v390, %v388
        %v473 = vpack.c.b16 %v391, %v389
        %v474 = vpack.c.b16 %v394, %v392
        %v475 = vpack.c.b16 %v395, %v393
        %v476 = vpack.c.b16 %v398, %v396
        %v477 = vpack.c.b16 %v399, %v397
        %v478 = vpack.c.b16 %v402, %v400
        %v479 = vpack.c.b16 %v403, %v401
        %v480 = vpack.c.b16 %v406, %v404
        %v481 = vpack.c.b16 %v407, %v405
        %v482 = vpack.c.b16 %v410, %v408
        %v483 = vpack.c.b16 %v411, %v409
        %v484 = vpack.c.b16 %v414, %v412
        %v485 = vpack.c.b16 %v415, %v413
        %v486 = vpack.c.b16 %v418, %v416
        %v487 = vpack.c.b16 %v419, %v417
        %v488 = vpack.c.b16 %v422, %v420
        %v489 = vpack.c.b16 %v423, %v421
        %v490 = vpack.c.b16 %v426, %v424
        %v491 = vpack.c.b16 %v427, %v425
        %v492 = vpack.c.b16 %v430, %v428
        %v493 = vpack.c.b16 %v431, %v429
        %v494 = vpack.c.b16 %v434, %v432
        %v495 = vpack.c.b16 %v435, %v433
        %v496 = vpack.c.b16 %v438, %v436
        %v497 = vpack.c.b16 %v439, %v437
        %v498 = vpack.c.b16 %v442, %v440
        %v499 = vpack.c.b16 %v443, %v441
        %v500 = vpack.c.b16 %v446, %v444
        %v501 = vpack.c.b16 %v447, %v445
        %v502 = vpack.c.b16 %v450, %v448
        %v503 = vpack.c.b16 %v451, %v449
        %v504 = vpack.c.b16 %v454, %v452
        %v505 = vpack.c.b16 %v455, %v453
        %v506 = vpack.c.b16 %v458, %v456
        %v507 = vpack.c.b16 %v459, %v457
        %556 = vmatpush.bf16.msra.mxu0 %v474
        %557 = vmatpush.bf16.msra.mxu0 %v472
        %558 = vmatpush.bf16.msra.mxu0 %v470
        %559 = vmatpush.bf16.msra.mxu0 %v468
        %560 = vmatpush.bf16.msra.mxu0 %v466
        %561 = vmatpush.bf16.msra.mxu0 %v464
        %562 = vmatpush.bf16.msra.mxu0 %v462
        %563 = vmatpush.bf16.msra.mxu0 %v460
        %564 = vmatmul.bf16.gmra.mxu0 %v310
        %v565 = vpop.f32.mrf.mxu0
        %v566 = vadd.f32 0.0, %v565
        %v567 = vpop.f32.mrf.mxu0
        %568 = vdwg.mxu0
        %569 = vmatpush.bf16.msra.mxu0 %v490
        %570 = vmatpush.bf16.msra.mxu0 %v488
        %571 = vmatpush.bf16.msra.mxu0 %v486
        %572 = vmatpush.bf16.msra.mxu0 %v484
        %573 = vmatpush.bf16.msra.mxu0 %v482
        %574 = vmatpush.bf16.msra.mxu0 %v480
        %575 = vmatpush.bf16.msra.mxu0 %v478
        %576 = vmatpush.bf16.msra.mxu0 %v476
        %577 = vmatmul.bf16.gmra.mxu0 %v311
        %v578 = vpop.f32.mrf.mxu0
        %v579 = vadd.f32 %v566, %v578
        %v580 = vpop.f32.mrf.mxu0
        %581 = vdwg.mxu0
        %582 = vmatpush.bf16.msra.mxu0 %v506
        %583 = vmatpush.bf16.msra.mxu0 %v504
        %584 = vmatpush.bf16.msra.mxu0 %v502
        %585 = vmatpush.bf16.msra.mxu0 %v500
        %586 = vmatpush.bf16.msra.mxu0 %v498
        %587 = vmatpush.bf16.msra.mxu0 %v496
        %588 = vmatpush.bf16.msra.mxu0 %v494
        %589 = vmatpush.bf16.msra.mxu0 %v492
        %590 = vmatmul.bf16.gmra.mxu0 %v312
        %v591 = vpop.f32.mrf.mxu0
        %v592 = vadd.f32 %v579, %v591
        %v593 = vpop.f32.mrf.mxu0
        %594 = vdwg.mxu0
        %595 = vmatpush.bf16.msra.mxu0 %v475
        %596 = vmatpush.bf16.msra.mxu0 %v473
        %597 = vmatpush.bf16.msra.mxu0 %v471
        %598 = vmatpush.bf16.msra.mxu0 %v469
        %599 = vmatpush.bf16.msra.mxu0 %v467
        %600 = vmatpush.bf16.msra.mxu0 %v465
        %601 = vmatpush.bf16.msra.mxu0 %v463
        %602 = vmatpush.bf16.msra.mxu0 %v461
        %603 = vmatmul.bf16.gmra.mxu0 %v310
        %v604 = vpop.f32.mrf.mxu0
        %v605 = vadd.f32 0.0, %v604
        %v606 = vpop.f32.mrf.mxu0
        %607 = vdwg.mxu0
        %608 = vmatpush.bf16.msra.mxu0 %v491
        %609 = vmatpush.bf16.msra.mxu0 %v489
        %610 = vmatpush.bf16.msra.mxu0 %v487
        %611 = vmatpush.bf16.msra.mxu0 %v485
        %612 = vmatpush.bf16.msra.mxu0 %v483
        %613 = vmatpush.bf16.msra.mxu0 %v481
        %614 = vmatpush.bf16.msra.mxu0 %v479
        %615 = vmatpush.bf16.msra.mxu0 %v477
        %616 = vmatmul.bf16.gmra.mxu0 %v311
        %v617 = vpop.f32.mrf.mxu0
        %v618 = vadd.f32 %v605, %v617
        %v619 = vpop.f32.mrf.mxu0
        %620 = vdwg.mxu0
        %621 = vmatpush.bf16.msra.mxu0 %v507
        %622 = vmatpush.bf16.msra.mxu0 %v505
        %623 = vmatpush.bf16.msra.mxu0 %v503
        %624 = vmatpush.bf16.msra.mxu0 %v501
        %625 = vmatpush.bf16.msra.mxu0 %v499
        %626 = vmatpush.bf16.msra.mxu0 %v497
        %627 = vmatpush.bf16.msra.mxu0 %v495
        %628 = vmatpush.bf16.msra.mxu0 %v493
        %629 = vmatmul.bf16.gmra.mxu0 %v312
        %v630 = vpop.f32.mrf.mxu0
        %v631 = vadd.f32 %v618, %v630
        %v632 = vpop.f32.mrf.mxu0
        %633 = vdwg.mxu0
        %v636 = vrot.slane %v631, 7
        %vm637 = vcmask 1040384
        %v638 = vsel %vm637, %v592, %v636
        %v640 = vadd.f32 %v258, %v638
        %v641 = vlaneseq
        %vm642 = vcmp.ge.s32.totalorder %v641, 0
        %vm643 = vcmp.lt.s32.totalorder %v641, 256
        %vm644 = vmand %vm642, %vm643
        %645 = vst.msk [vmem:[%s235] sm:$0x3] %vm644, %v640
        // Predicated region
        $region41: #{pallas_matmul_fused.1} parent=31 // pred_check
          %p646 = pneg %p249
        $region42: #{pallas_matmul_fused.1} parent=31 // pred_check_branch
          %648 = sbr.rel (%p646) target = $region44
        $region43: #{pallas_matmul_fused.1} parent=31 // pred_region
          %v649 = vld [vmem:[%s235] sm:$0x3]
          %v650 = vld [vmem:[%s246] sm:$0x3]
          %v651 = vadd.f32 %v649, %v650
          %v652 = vxor.u32 %v651, 2147483648
          %v653 = vmul.f32 %v652, 1.442695
          %v654 = vpow.pop %v653
          %v655 = vadd.f32 %v654, 1.0
          %v656 = vrcp.pop %v655
          %v657 = vmul.f32 %v655, %v656
          %v658 = vsub.f32 1.0, %v657
          %v659 = vmul.f32 %v656, %v658
          %v660 = vadd.f32 %v656, %v659
          %vm661 = vweird.f32 %v655
          %vm662 = vweird.f32 %v656
          %vm663 = vmor %vm661, %vm662
          %v664 = vsel %vm663, %v656, %v660
          %v665 = vand.u32 2147483647, %v655
          %vm666 = vcmp.eq.f32.partialorder %v665, 8.507059e+37
          %v667 = vand.u32 %v655, 2147483648
          %v668 = vor.u32 1.1754944e-38, %v667
          %v669 = vsel %vm666, %v668, %v664
          %v670 = vmul.f32 1.0, %v669
          %v671 = vmul.f32 %v651, %v670
          %672 = vst.msk [vmem:[%s235] sm:$0x3] %vm644, %v671
        $region44: #{pallas_matmul_fused.1} parent=31 // pred_fallthru
          _
        %s673 = sand.u32 %s120, 1
        %s674 = scalar_lea.sflag [#allocation4], %s673
        %s675 = sand.u32 %s120, 1
        %s676 = smul.addr %s675, 2
        %s677 = scalar_lea.vmem [#allocation5], %s676
        // Predicated region
        $region45: #{pallas_matmul_fused.1} parent=31 // pred_check
          %p678 = pneg %p130
        $region46: #{pallas_matmul_fused.1} parent=31 // pred_check_branch
          %680 = sbr.rel (%p678) target = $region48
        $region47: #{pallas_matmul_fused.1} parent=31 // pred_region
          %s681 = smul.u32 2, %s24
          %683 = vsyncadd %s674, 0
          %s684 = scalar_lea.hbm %s3, %s681
          %s686 = sshll.u32 %s677, 4
          %s687 = int_to_ptr.vmem [resolvable:$true] %s686
          %s688 = sshll.u32 %s684, 4
          %s689 = int_to_ptr.hbm [resolvable:$true] %s688
          %691 = dma.vmem_to_hbm [thread:$0]  %s687, 32, %s689, %s674
        $region48: #{pallas_matmul_fused.1} parent=31 // pred_fallthru
          _
      $region32: #{pallas_matmul_fused.1} parent=5 // pred_fallthru
        _
      %p692 = scmp.le.s32.totalorder 2, %s15
      // Predicated region
      $region49: #{pallas_matmul_fused.1} parent=5 // pred_check
        %p693 = pneg %p692
      $region50: #{pallas_matmul_fused.1} parent=5 // pred_check_branch
        %695 = sbr.rel (%p693) target = $region52
      $region51: #{pallas_matmul_fused.1} parent=5 // pred_region
        %s696 = ssub.s32 %s15, 2
        // Predicated region
        $region53: #{pallas_matmul_fused.1} parent=51 // pred_check
          %p697 = pneg %p136
        $region54: #{pallas_matmul_fused.1} parent=51 // pred_check_branch
          %699 = sbr.rel (%p697) target = $region56
        $region55: #{pallas_matmul_fused.1} parent=51 // pred_region
          %s700 = sand.u32 %s121, 1
          %s701 = scalar_lea.sflag [#allocation4], %s700
          %s702 = sand.u32 %s121, 1
          %s703 = smul.addr %s702, 2
          %s704 = scalar_lea.vmem [#allocation5], %s703
          %706 = dma.done %s701, 32
        $region56: #{pallas_matmul_fused.1} parent=51 // pred_fallthru
          _
      $region52: #{pallas_matmul_fused.1} parent=5 // pred_fallthru
        _
    $region6: #{pallas_matmul_fused.1} parent=1 // loop_footer
      %s19 = sadd.s32 1, %s15
    $region7: #{pallas_matmul_fused.1} parent=1 // loop_footer_branch
      %14 = sbr.rel target = $region3
    $region8: #{pallas_matmul_fused.1} parent=1 // loop_exit
      _
    %707 = vsyncpa [#allocation3], 1
    %s708 = scalar_lea.sflag [#allocation3], 1
    %709 = vsyncpa %s708, 1
    %710 = vsyncpa [#allocation4], 1
    %s711 = scalar_lea.sflag [#allocation4], 1
    %712 = vsyncpa %s711, 1

</llo_original>
